<compile_context>
chip_gen: v6e
topology: v6e:2x2x1
jax: 0.10.0
libtpu: 0.0.40
codegen_flags: <defaults>
</compile_context>

<pallas_src>
import functools
import math

import jax
import jax.numpy as jnp
from jax import lax
from jax.experimental import pallas as pl
from jax.experimental.pallas import tpu as pltpu

EPS = 1e-20  # matches the PyTorch module (inputs - 1e-20 / 1 - inputs + 1e-20)


def _bce_kernel(x_ref, t_ref, e_ref, out_ref, *, inv_neg_rows, binary_target):
    """Accumulate column-wise sums of the BCE log terms over row tiles.

    Grid = (splits, steps): axis 0 is 'parallel' (independent partial sums, one
    output row each -> both v7x TensorCores), axis 1 is the row reduction.
    The output block itself is the accumulator (resident across axis 1).
    """
    j = pl.program_id(1)

    @pl.when(j == 0)
    def _():
        out_ref[...] = jnp.zeros_like(out_ref)

    x = x_ref[...].astype(jnp.float32)        # (TG, G*C)  lane-dense
    t = t_ref[...].astype(jnp.float32)        # (TG, G)

    if e_ref.shape[0] == 1:
        # G == 1 (C already a multiple of 128): native lane broadcast suffices.
        t_b = t                               # (TG, 1)
    else:
        # Broadcast each per-row target across its C columns with one tiny
        # 0/1 matmul on the otherwise-idle MXU. HIGHEST precision makes the
        # multiply-by-{0,1} exact (also for soft targets).
        t_b = jnp.dot(t, e_ref[...],
                      precision=lax.Precision.HIGHEST,
                      preferred_element_type=jnp.float32)   # (TG, G*C)

    if binary_target:
        # One EUP log per element: select the log argument first.
        # Exact for {0,1} targets (the intended use of this module).
        arg = jnp.where(t_b > 0.5, x - EPS, 1.0 - x + EPS)
        contrib = jnp.log(arg)
    else:
        # Exact soft-target formula from the PyTorch module (two logs).
        contrib = t_b * jnp.log(x - EPS) + (1.0 - t_b) * jnp.log(1.0 - x + EPS)

    # Raw sum of the log terms; the -1/N scale is folded into the finalize.
    out_ref[...] += jnp.sum(contrib, axis=0, keepdims=True)

    @pl.when(j == pl.num_programs(1) - 1)
    def _():
        out_ref[...] = out_ref[...] * inv_neg_rows


def _pick_tile_groups(num_group_rows, lane_cols, max_tile_bytes):
    """Largest legal (multiple-of-8) row-group tile whose input slab fits the budget."""
    bytes_per_group_row = lane_cols * 4
    cap = max(8, max_tile_bytes // bytes_per_group_row)
    if num_group_rows <= cap:
        return num_group_rows              # whole reduction in one tile
    t = (cap // 8) * 8
    while t >= 8:
        if num_group_rows % t == 0:
            return t
        t -= 8
    return num_group_rows                  # unreachable: num_group_rows % 8 == 0


def bce_loss(inputs, target, *, binary_target=True, max_tile_bytes=4 * 1024 * 1024):
    """
    inputs: (N, C) probabilities; target: (N, 1) labels.
    Returns the (C,) per-column BCE loss (mean over rows), matching the module.
    Set binary_target=False for soft (non-{0,1}) targets (exact two-log formula).
    """
    N, C = inputs.shape
    assert target.shape == (N, 1), target.shape

    # ---- lane-dense relayout: last dim becomes a multiple of 128 -------------
    G = 1 if C % 128 == 0 else 128 // math.gcd(C, 128)
    lane_cols = G * C

    # Pad rows to a multiple of 8*G with (x=1, t=1) rows, which contribute
    # exactly 0 to the loss sum (1 - 1e-20 rounds to 1.0 in f32 -> log == 0).
    pad_to = 8 * G
    n_pad = (-N) % pad_to
    if n_pad:
        inputs = jnp.concatenate([inputs, jnp.ones((n_pad, C), inputs.dtype)], axis=0)
        target = jnp.concatenate([target, jnp.ones((n_pad, 1), target.dtype)], axis=0)
    B = (N + n_pad) // G                   # number of lane-dense group rows

    x_r = inputs.reshape(B, lane_cols)     # free row-major reshape
    t_r = target.reshape(B, G)
    # (G, G*C) 0/1 matrix: broadcasts target[g] across columns g*C .. g*C+C-1.
    expand = jnp.kron(jnp.eye(G, dtype=jnp.float32),
                      jnp.ones((1, C), dtype=jnp.float32))

    # ---- tiling / grid --------------------------------------------------------
    tg = _pick_tile_groups(B, lane_cols, max_tile_bytes)
    num_tiles = B // tg
    num_splits = 2 if (num_tiles % 2 == 0 and num_tiles >= 2) else 1
    steps = num_tiles // num_splits

    kernel = functools.partial(
        _bce_kernel,
        inv_neg_rows=-1.0 / float(N),      # original N, not the padded one
        binary_target=binary_target,
    )

    out = pl.pallas_call(
        kernel,
        out_shape=jax.ShapeDtypeStruct((num_splits, lane_cols), jnp.float32),
        grid_spec=pltpu.PrefetchScalarGridSpec(
            num_scalar_prefetch=0,
            grid=(num_splits, steps),
            in_specs=[
                pl.BlockSpec((tg, lane_cols), lambda i, j: (i * steps + j, 0)),
                pl.BlockSpec((tg, G),         lambda i, j: (i * steps + j, 0)),
                pl.BlockSpec((G, lane_cols),  lambda i, j: (0, 0)),  # VMEM-resident
            ],
            out_specs=pl.BlockSpec((1, lane_cols), lambda i, j: (i, 0)),
        ),
        compiler_params=pltpu.CompilerParams(
            dimension_semantics=("parallel", "arbitrary"),
            vmem_limit_bytes=32 * 1024 * 1024,
        ),
    )(x_r, t_r, expand)

    # (num_splits, G*C) partial column sums -> (C,) per-column loss.
    return out.reshape(num_splits * G, C).sum(axis=0)


def bce_loss_ref(inputs, target):
    """Pure-JAX reference with exactly the PyTorch module's formula."""
    prob_1 = inputs - EPS
    prob_0 = 1.0 - inputs + EPS
    return -1.0 * jnp.mean(
        target * jnp.log(prob_1) + (1.0 - target) * jnp.log(prob_0), axis=0)


if __name__ == "__main__":
    key = jax.random.PRNGKey(0)
    k1, k2, k3, k4 = jax.random.split(key, 4)

    # Small shapes consistent with the module: nrows x C inputs, nrows x 1 target.
    N, C = 256, 8
    inputs = jax.random.uniform(k1, (N, C), dtype=jnp.float32,
                                minval=0.05, maxval=0.95)
    target = jax.random.bernoulli(k2, 0.5, (N, 1)).astype(jnp.float32)

    out = jax.block_until_ready(bce_loss(inputs, target))
    ref = bce_loss_ref(inputs, target)
    assert out.shape == (C,), out.shape
    assert jnp.allclose(out, ref, rtol=1e-5, atol=1e-5), (out, ref)

    # Multi-tile case: exercises the accumulation loop, the 2-way 'parallel'
    # split, and the exact soft-target (two-log) path.
    N2, C2 = 4096, 8
    inputs2 = jax.random.uniform(k3, (N2, C2), dtype=jnp.float32,
                                 minval=0.05, maxval=0.95)
    target2 = jax.random.uniform(k4, (N2, 1), dtype=jnp.float32)
    out2 = jax.block_until_ready(
        bce_loss(inputs2, target2, binary_target=False, max_tile_bytes=32 * 1024))
    ref2 = bce_loss_ref(inputs2, target2)
    assert out2.shape == (C2,), out2.shape
    assert jnp.allclose(out2, ref2, rtol=5e-5, atol=1e-5), (out2, ref2)

    print("KERNEL_OK")
</pallas_src>

<mosaic_0001>
module attributes {stable_mosaic.version = 11 : i64} {
  func.func @_bce_kernel(%arg0: i32, %arg1: i32, %arg2: memref<16x128xf32, #tpu.memory_space<vmem>>, %arg3: memref<16x16xf32, #tpu.memory_space<vmem>>, %arg4: memref<16x128xf32, #tpu.memory_space<vmem>>, %arg5: memref<1x128xf32, #tpu.memory_space<vmem>>) attributes {dimension_semantics = [#tpu.dimension_semantics<parallel>, #tpu.dimension_semantics<arbitrary>], iteration_bounds = array<i64: 1, 1>, scalar_prefetch = 0 : i64, scratch_operands = 0 : i64, tpu.core_type = #tpu.core_type<tc>, window_params = [{transform_indices = @transform_0, window_bounds = array<i64: 16, 128>}, {transform_indices = @transform_1, window_bounds = array<i64: 16, 16>}, {pipeline_mode = #tpu.pipeline_mode<synchronous>, transform_indices = @transform_2, window_bounds = array<i64: 16, 128>}, {transform_indices = @transform_3, window_bounds = array<i64: 1, 128>}]} {
    %c0_i32 = arith.constant 0 : i32
    %0 = arith.cmpi eq, %arg1, %c0_i32 : i32
    %1 = arith.extui %0 : i1 to i32
    %c0_i32_0 = arith.constant 0 : i32
    %2 = arith.cmpi ne, %1, %c0_i32_0 : i32
    scf.if %2 {
      %cst_17 = arith.constant 0.000000e+00 : f32
      %25 = vector.broadcast %cst_17 : f32 to vector<1x128xf32>
      %c0_18 = arith.constant 0 : index
      %c0_19 = arith.constant 0 : index
      %26 = vector.load %arg5[%c0_18, %c0_19] : memref<1x128xf32, #tpu.memory_space<vmem>>, vector<1x128xf32>
      tpu.vector_store %arg5[%c0_18, %c0_19], %25 {strides = array<i32>} : memref<1x128xf32, #tpu.memory_space<vmem>>, vector<1x128xf32>,
    } else {
    }
    %c0 = arith.constant 0 : index
    %c0_1 = arith.constant 0 : index
    %3 = vector.load %arg2[%c0, %c0_1] : memref<16x128xf32, #tpu.memory_space<vmem>>, vector<16x128xf32>
    %c0_2 = arith.constant 0 : index
    %c0_3 = arith.constant 0 : index
    %4 = vector.load %arg3[%c0_2, %c0_3] : memref<16x16xf32, #tpu.memory_space<vmem>>, vector<16x16xf32>
    %c0_4 = arith.constant 0 : index
    %c0_5 = arith.constant 0 : index
    %5 = vector.load %arg4[%c0_4, %c0_5] : memref<16x128xf32, #tpu.memory_space<vmem>>, vector<16x128xf32>
    %cst = arith.constant dense<0.000000e+00> : vector<16x128xf32>
    %6 = tpu.matmul %4, %5, %cst {dimension_numbers = #tpu.dot_dimension_numbers<[1], [0], [0], [1], [0, 0, 1, 1], [], []>, precision = #tpu.contract_precision<fp32>} : vector<16x16xf32>, vector<16x128xf32>, vector<16x128xf32> -> vector<16x128xf32>
    %cst_6 = arith.constant 5.000000e-01 : f32
    %7 = vector.broadcast %cst_6 : f32 to vector<16x128xf32>
    %8 = arith.cmpf ogt, %6, %7 : vector<16x128xf32>
    %cst_7 = arith.constant 9.99999968E-21 : f32
    %9 = vector.broadcast %cst_7 : f32 to vector<16x128xf32>
    %10 = arith.subf %3, %9 : vector<16x128xf32>
    %cst_8 = arith.constant 1.000000e+00 : f32
    %11 = vector.broadcast %cst_8 : f32 to vector<16x128xf32>
    %12 = arith.subf %11, %3 : vector<16x128xf32>
    %cst_9 = arith.constant 9.99999968E-21 : f32
    %13 = vector.broadcast %cst_9 : f32 to vector<16x128xf32>
    %14 = arith.addf %12, %13 : vector<16x128xf32>
    %15 = arith.select %8, %10, %14 : vector<16x128xi1>, vector<16x128xf32>
    %16 = math.log %15 : vector<16x128xf32>
    %c0_10 = arith.constant 0 : index
    %c0_11 = arith.constant 0 : index
    %17 = vector.load %arg5[%c0_10, %c0_11] : memref<1x128xf32, #tpu.memory_space<vmem>>, vector<1x128xf32>
    %cst_12 = arith.constant dense<0.000000e+00> : vector<128xf32>
    %18 = vector.multi_reduction <add>, %16, %cst_12 [0] : vector<16x128xf32> to vector<128xf32>
    %19 = vector.shape_cast %18 : vector<128xf32> to vector<1x128xf32>
    %20 = arith.addf %17, %19 : vector<1x128xf32>
    %c0_13 = arith.constant 0 : index
    %c0_14 = arith.constant 0 : index
    %21 = vector.load %arg5[%c0_13, %c0_14] : memref<1x128xf32, #tpu.memory_space<vmem>>, vector<1x128xf32>
    tpu.vector_store %arg5[%c0_13, %c0_14], %20 {strides = array<i32>} : memref<1x128xf32, #tpu.memory_space<vmem>>, vector<1x128xf32>,
    %c0_i32_15 = arith.constant 0 : i32
    %22 = arith.cmpi eq, %arg1, %c0_i32_15 : i32
    %23 = arith.extui %22 : i1 to i32
    %c0_i32_16 = arith.constant 0 : i32
    %24 = arith.cmpi ne, %23, %c0_i32_16 : i32
    scf.if %24 {
      %c0_17 = arith.constant 0 : index
      %c0_18 = arith.constant 0 : index
      %25 = vector.load %arg5[%c0_17, %c0_18] : memref<1x128xf32, #tpu.memory_space<vmem>>, vector<1x128xf32>
      %cst_19 = arith.constant -3.906250e-03 : f32
      %26 = vector.broadcast %cst_19 : f32 to vector<1x128xf32>
      %27 = arith.mulf %25, %26 : vector<1x128xf32>
      %c0_20 = arith.constant 0 : index
      %c0_21 = arith.constant 0 : index
      %28 = vector.load %arg5[%c0_20, %c0_21] : memref<1x128xf32, #tpu.memory_space<vmem>>, vector<1x128xf32>
      tpu.vector_store %arg5[%c0_20, %c0_21], %27 {strides = array<i32>} : memref<1x128xf32, #tpu.memory_space<vmem>>, vector<1x128xf32>,
    } else {
    }
    return
  }
  func.func @transform_0(%arg0: i32, %arg1: i32) -> (i32, i32) {
    %c1_i32 = arith.constant 1 : i32
    %0 = arith.muli %arg0, %c1_i32 : i32
    %1 = arith.addi %0, %arg1 : i32
    %c0_i32 = arith.constant 0 : i32
    %c0_i32_0 = arith.constant 0 : i32
    return %1, %c0_i32 : i32, i32
  }
  func.func @transform_1(%arg0: i32, %arg1: i32) -> (i32, i32) {
    %c1_i32 = arith.constant 1 : i32
    %0 = arith.muli %arg0, %c1_i32 : i32
    %1 = arith.addi %0, %arg1 : i32
    %c0_i32 = arith.constant 0 : i32
    %c0_i32_0 = arith.constant 0 : i32
    return %1, %c0_i32 : i32, i32
  }
  func.func @transform_2(%arg0: i32, %arg1: i32) -> (i32, i32) {
    %c0_i32 = arith.constant 0 : i32
    %c0_i32_0 = arith.constant 0 : i32
    %c0_i32_1 = arith.constant 0 : i32
    return %c0_i32, %c0_i32_0 : i32, i32
  }
  func.func @transform_3(%arg0: i32, %arg1: i32) -> (i32, i32) {
    %c0_i32 = arith.constant 0 : i32
    %c0_i32_0 = arith.constant 0 : i32
    return %arg0, %c0_i32 : i32, i32
  }
}

</mosaic_0001>

<llo_original>
// kernel: tpu_custom_call.1
$region0: #{tpu_custom_call.1}
  #allocation0 [shape = 'u32[]', space=smem, size = 0x4, offset = 0x4, fixed_abs, tag = 'smem constant byte address 0x4 - core index']
  #allocation1 [shape = 'u32[144,128]{1,0:T(1,128)}', space=vmem, size = 0x12000, scoped, tag = 'internal scratch']
  %s0 = inlined_call_operand.hbm [shape: f32[16,128], index: 0, kind: input, shape index: {}]
  %s1 = inlined_call_operand.hbm [shape: f32[16,16], index: 1, kind: input, shape index: {}]
  %s2 = inlined_call_operand.hbm [shape: f32[16,128], index: 2, kind: input, shape index: {}]
  %s3 = inlined_call_operand.hbm [shape: f32[1,128], index: 3, kind: output, shape index: {}]
  %s4 = sld [smem:[#allocation0]]
  $region42: #{tpu_custom_call.1} parent=0
    _
  %s6 = ssub.s32 1, %s4
  %s7 = scalar_select 0, %s6, %s4
  $region1: #{tpu_custom_call.1} parent=0
    #allocation2 [shape = 'u8[8192]{0}', space=vmem, size = 0x2000, scoped, tag = 'input window, operand 0, single buffered']
    #allocation3 [shape = 's32[1]{0}', space=sflag, size = 0x4, scoped, tag = 'scoped memory for tpu_custom_call.1']
    #allocation4 [shape = 's32[1]{0}', space=sflag, size = 0x4, scoped, tag = 'scoped memory for tpu_custom_call.1']
    #allocation5 [shape = 'u8[8192]{0}', space=vmem, size = 0x2000, scoped, tag = 'input window, operand 1, single buffered']
    #allocation6 [shape = 's32[1]{0}', space=sflag, size = 0x4, scoped, tag = 'scoped memory for tpu_custom_call.1']
    #allocation7 [shape = 'u8[8192]{0}', space=vmem, size = 0x2000, scoped, tag = 'input window, operand 2, single buffered']
    #allocation8 [shape = 'u8[512]{0}', space=vmem, size = 0x400, scoped, tag = 'output window, operand 0, single buffered']
    %8 = vsyncpa [#allocation3], 0
    %9 = vsyncpa [#allocation6], 0
    %10 = vsyncpa [#allocation4], 0
    // Predicated region
    $region2: #{tpu_custom_call.1} parent=1 // pred_check
      _
    $region3: #{tpu_custom_call.1} parent=1 // pred_check_branch
      %12 = sbr.rel (0) target = $region5
    $region4: #{tpu_custom_call.1} parent=1 // pred_region
      %s13 = sadd.s32 0, 0
      %s14 = smul.u32 2, %s13
      %s16 = ssub.s32 256, 256
      %17 = vsyncadd [#allocation3], %s16
      %s18 = smul.addr %s14, 128
      %s19 = scalar_lea.hbm %s0, %s18
      %s20 = sshll.u32 [#allocation2], 4
      %s21 = int_to_ptr.vmem [resolvable:$true] %s20
      %26 = dma.hbm_to_vmem [thread:$0]  %s19, 256, %s21, [#allocation3], 128, 128, 8
    $region5: #{tpu_custom_call.1} parent=1 // pred_fallthru
      _
    // Predicated region
    $region6: #{tpu_custom_call.1} parent=1 // pred_check
      _
    $region7: #{tpu_custom_call.1} parent=1 // pred_check_branch
      %28 = sbr.rel (0) target = $region9
    $region8: #{tpu_custom_call.1} parent=1 // pred_region
      %s29 = sadd.s32 0, 0
      %s30 = smul.u32 2, %s29
      %s32 = ssub.s32 256, 256
      %33 = vsyncadd [#allocation6], %s32
      %s34 = smul.addr %s30, 128
      %s35 = scalar_lea.hbm %s1, %s34
      %s36 = sshll.u32 [#allocation5], 4
      %s37 = int_to_ptr.vmem [resolvable:$true] %s36
      %42 = dma.hbm_to_vmem [thread:$0]  %s35, 256, %s37, [#allocation6], 128, 128, 8
    $region9: #{tpu_custom_call.1} parent=1 // pred_fallthru
      _
    // Predicated region
    $region10: #{tpu_custom_call.1} parent=1 // pred_check
      _
    $region11: #{tpu_custom_call.1} parent=1 // pred_check_branch
      %44 = sbr.rel (0) target = $region13
    $region12: #{tpu_custom_call.1} parent=1 // pred_region
      %s46 = ssub.s32 256, 256
      %47 = vsyncadd [#allocation6], %s46
      %s48 = sshll.u32 [#allocation7], 4
      %s49 = int_to_ptr.vmem [resolvable:$true] %s48
      %54 = dma.hbm_to_vmem [thread:$0]  %s2, 256, %s49, [#allocation6], 128, 128, 8
    $region13: #{tpu_custom_call.1} parent=1 // pred_fallthru
      _
    // Predicated region
    $region14: #{tpu_custom_call.1} parent=1 // pred_check
      _
    $region15: #{tpu_custom_call.1} parent=1 // pred_check_branch
      %56 = sbr.rel (0) target = $region17
    $region16: #{tpu_custom_call.1} parent=1 // pred_region
      %57 = dma.done [#allocation3], 256
    $region17: #{tpu_custom_call.1} parent=1 // pred_fallthru
      _
    // Predicated region
    $region18: #{tpu_custom_call.1} parent=1 // pred_check
      _
    $region19: #{tpu_custom_call.1} parent=1 // pred_check_branch
      %59 = sbr.rel (0) target = $region21
    $region20: #{tpu_custom_call.1} parent=1 // pred_region
      %60 = dma.done [#allocation6], 256
    $region21: #{tpu_custom_call.1} parent=1 // pred_fallthru
      _
    // Predicated region
    $region22: #{tpu_custom_call.1} parent=1 // pred_check
      _
    $region23: #{tpu_custom_call.1} parent=1 // pred_check_branch
      %62 = sbr.rel (0) target = $region25
    $region24: #{tpu_custom_call.1} parent=1 // pred_region
      %63 = dma.done [#allocation6], 256
    $region25: #{tpu_custom_call.1} parent=1 // pred_fallthru
      _
    %s64 = sadd.s32 0, 0
    %s65 = smul.u32 2, %s64
    %s66 = sadd.s32 0, 0
    %s67 = smul.u32 2, %s66
    %p68 = scmp.eq.s32.totalorder 0, 0
    // Predicated region
    $region26: #{tpu_custom_call.1} parent=1 // pred_check
      %p69 = pneg %p68
    $region27: #{tpu_custom_call.1} parent=1 // pred_check_branch
      %71 = sbr.rel (%p69) target = $region29
    $region28: #{tpu_custom_call.1} parent=1 // pred_region
      %72 = vst [vmem:[#allocation8] sm:$0x1] 0.0
    $region29: #{tpu_custom_call.1} parent=1 // pred_fallthru
      _
    %v73 = vld [vmem:[#allocation2] sm:$0xff]
    %v74 = vld [vmem:[#allocation2 + $0x8] sm:$0xff]
    %v75 = vld [vmem:[#allocation5] sm:$0xff]
    %v76 = vld [vmem:[#allocation5 + $0x8] sm:$0xff]
    %v77 = vld [vmem:[#allocation7] sm:$0xff]
    %v78 = vld [vmem:[#allocation7 + $0x8] sm:$0xff]
    %vm79 = vcmask 130048
    %v81 = vsel %vm79, %v75, 0
    %v84 = vsel %vm79, %v76, 0
    %86 = vmatprep.subr.mxu0 0.0
    %87 = vmatpush1.msra.mxu0 0.0
    %88 = vmatprep.subr.mxu0 0.0
    %89 = vmatpush1.msra.mxu0 0.0
    %90 = vmatprep.subr.mxu0 0.0
    %91 = vmatpush1.msra.mxu0 0.0
    %92 = vmatprep.subr.mxu0 0.0
    %93 = vmatpush1.msra.mxu0 0.0
    %94 = vmatprep.subr.mxu0 0.0
    %95 = vmatpush1.msra.mxu0 0.0
    %96 = vmatprep.subr.mxu0 0.0
    %97 = vmatpush1.msra.mxu0 0.0
    %98 = vmatprep.subr.mxu0 0.0
    %99 = vmatpush1.msra.mxu0 0.0
    %100 = vmatprep.subr.mxu0 0.0
    %101 = vmatpush1.msra.mxu0 0.0
    %102 = vmatprep.subr.mxu0 0.0
    %103 = vmatpush1.msra.mxu0 0.0
    %104 = vmatprep.subr.mxu0 0.0
    %105 = vmatpush1.msra.mxu0 0.0
    %106 = vmatprep.subr.mxu0 0.0
    %107 = vmatpush1.msra.mxu0 0.0
    %108 = vmatprep.subr.mxu0 0.0
    %109 = vmatpush1.msra.mxu0 0.0
    %110 = vmatprep.subr.mxu0 0.0
    %111 = vmatpush1.msra.mxu0 0.0
    %112 = vmatprep.subr.mxu0 0.0
    %113 = vmatpush1.msra.mxu0 0.0
    %114 = vmatprep.subr.mxu0 0.0
    %v115 = vand.u32 %v78, 4294901760
    %116 = vmatpush1.msra.mxu0 %v115
    %117 = vmatprep.subr.mxu0 0.0
    %v118 = vand.u32 %v77, 4294901760
    %119 = vmatpush1.msra.mxu0 %v118
    %120 = vmatprep.subr.mxu0 0.0
    %121 = vmatpush2.msra.mxu0 0.0
    %122 = vmatprep.subr.mxu0 0.0
    %123 = vmatpush2.msra.mxu0 0.0
    %124 = vmatprep.subr.mxu0 0.0
    %125 = vmatpush2.msra.mxu0 0.0
    %126 = vmatprep.subr.mxu0 0.0
    %127 = vmatpush2.msra.mxu0 0.0
    %128 = vmatprep.subr.mxu0 0.0
    %129 = vmatpush2.msra.mxu0 0.0
    %130 = vmatprep.subr.mxu0 0.0
    %131 = vmatpush2.msra.mxu0 0.0
    %132 = vmatprep.subr.mxu0 0.0
    %133 = vmatpush2.msra.mxu0 0.0
    %134 = vmatprep.subr.mxu0 0.0
    %135 = vmatpush2.msra.mxu0 0.0
    %136 = vmatprep.subr.mxu0 0.0
    %137 = vmatpush2.msra.mxu0 0.0
    %138 = vmatprep.subr.mxu0 0.0
    %139 = vmatpush2.msra.mxu0 0.0
    %140 = vmatprep.subr.mxu0 0.0
    %141 = vmatpush2.msra.mxu0 0.0
    %142 = vmatprep.subr.mxu0 0.0
    %143 = vmatpush2.msra.mxu0 0.0
    %144 = vmatprep.subr.mxu0 0.0
    %145 = vmatpush2.msra.mxu0 0.0
    %146 = vmatprep.subr.mxu0 0.0
    %147 = vmatpush2.msra.mxu0 0.0
    %148 = vmatprep.subr.mxu0 0.0
    %149 = vmatpush2.msra.mxu0 0.0
    %150 = vmatprep.subr.mxu0 0.0
    %151 = vmatpush2.msra.mxu0 0.0
    %152 = vmatprep.mubr.f32.mxu0 0.0
    %v153 = vand.u32 %v81, 4294901760
    %v154 = vsub.f32 %v81, %v153
    %v155 = vand.u32 %v154, 4294901760
    %v156 = vsub.f32 %v154, %v155
    %v157 = vand.u32 %v156, 4294901760
    %158 = vmatmul.mubr.f32.gmra.mxu0 %v157
    %v159 = vpop.f32.mrf.mxu0
    %v160 = vadd.f32 0.0, %v159
    %v161 = vpop.f32.mrf.mxu0
    %162 = vmatprep.mubr.f32.mxu0 0.0
    %v163 = vand.u32 %v84, 4294901760
    %v164 = vsub.f32 %v84, %v163
    %v165 = vand.u32 %v164, 4294901760
    %v166 = vsub.f32 %v164, %v165
    %v167 = vand.u32 %v166, 4294901760
    %168 = vmatmul.mubr.f32.gmra.mxu0 %v167
    %v169 = vpop.f32.mrf.mxu0
    %v170 = vadd.f32 0.0, %v169
    %v171 = vpop.f32.mrf.mxu0
    %172 = vdwg.mxu0
    %173 = vmatprep.subr.mxu0 0.0
    %174 = vmatpush1.msra.mxu0 0.0
    %175 = vmatprep.subr.mxu0 0.0
    %176 = vmatpush1.msra.mxu0 0.0
    %177 = vmatprep.subr.mxu0 0.0
    %178 = vmatpush1.msra.mxu0 0.0
    %179 = vmatprep.subr.mxu0 0.0
    %180 = vmatpush1.msra.mxu0 0.0
    %181 = vmatprep.subr.mxu0 0.0
    %182 = vmatpush1.msra.mxu0 0.0
    %183 = vmatprep.subr.mxu0 0.0
    %184 = vmatpush1.msra.mxu0 0.0
    %185 = vmatprep.subr.mxu0 0.0
    %186 = vmatpush1.msra.mxu0 0.0
    %187 = vmatprep.subr.mxu0 0.0
    %188 = vmatpush1.msra.mxu0 0.0
    %189 = vmatprep.subr.mxu0 0.0
    %190 = vmatpush1.msra.mxu0 0.0
    %191 = vmatprep.subr.mxu0 0.0
    %192 = vmatpush1.msra.mxu0 0.0
    %193 = vmatprep.subr.mxu0 0.0
    %194 = vmatpush1.msra.mxu0 0.0
    %195 = vmatprep.subr.mxu0 0.0
    %196 = vmatpush1.msra.mxu0 0.0
    %197 = vmatprep.subr.mxu0 0.0
    %198 = vmatpush1.msra.mxu0 0.0
    %199 = vmatprep.subr.mxu0 0.0
    %200 = vmatpush1.msra.mxu0 0.0
    %201 = vmatprep.subr.mxu0 0.0
    %v202 = vand.u32 %v78, 4294901760
    %v203 = vsub.f32 %v78, %v202
    %v204 = vand.u32 %v203, 4294901760
    %v205 = vsub.f32 %v203, %v204
    %v206 = vand.u32 %v205, 4294901760
    %207 = vmatpush1.msra.mxu0 %v206
    %208 = vmatprep.subr.mxu0 0.0
    %v209 = vand.u32 %v77, 4294901760
    %v210 = vsub.f32 %v77, %v209
    %v211 = vand.u32 %v210, 4294901760
    %v212 = vsub.f32 %v210, %v211
    %v213 = vand.u32 %v212, 4294901760
    %214 = vmatpush1.msra.mxu0 %v213
    %215 = vmatprep.subr.mxu0 0.0
    %216 = vmatpush2.msra.mxu0 0.0
    %217 = vmatprep.subr.mxu0 0.0
    %218 = vmatpush2.msra.mxu0 0.0
    %219 = vmatprep.subr.mxu0 0.0
    %220 = vmatpush2.msra.mxu0 0.0
    %221 = vmatprep.subr.mxu0 0.0
    %222 = vmatpush2.msra.mxu0 0.0
    %223 = vmatprep.subr.mxu0 0.0
    %224 = vmatpush2.msra.mxu0 0.0
    %225 = vmatprep.subr.mxu0 0.0
    %226 = vmatpush2.msra.mxu0 0.0
    %227 = vmatprep.subr.mxu0 0.0
    %228 = vmatpush2.msra.mxu0 0.0
    %229 = vmatprep.subr.mxu0 0.0
    %230 = vmatpush2.msra.mxu0 0.0
    %231 = vmatprep.subr.mxu0 0.0
    %232 = vmatpush2.msra.mxu0 0.0
    %233 = vmatprep.subr.mxu0 0.0
    %234 = vmatpush2.msra.mxu0 0.0
    %235 = vmatprep.subr.mxu0 0.0
    %236 = vmatpush2.msra.mxu0 0.0
    %237 = vmatprep.subr.mxu0 0.0
    %238 = vmatpush2.msra.mxu0 0.0
    %239 = vmatprep.subr.mxu0 0.0
    %240 = vmatpush2.msra.mxu0 0.0
    %241 = vmatprep.subr.mxu0 0.0
    %242 = vmatpush2.msra.mxu0 0.0
    %243 = vmatprep.subr.mxu0 0.0
    %244 = vmatpush2.msra.mxu0 0.0
    %245 = vmatprep.subr.mxu0 0.0
    %246 = vmatpush2.msra.mxu0 0.0
    %247 = vmatprep.mubr.f32.mxu0 0.0
    %v248 = vand.u32 %v81, 4294901760
    %249 = vmatmul.mubr.f32.gmra.mxu0 %v248
    %v250 = vpop.f32.mrf.mxu0
    %v251 = vadd.f32 %v160, %v250
    %v252 = vpop.f32.mrf.mxu0
    %253 = vmatprep.mubr.f32.mxu0 0.0
    %v254 = vand.u32 %v84, 4294901760
    %255 = vmatmul.mubr.f32.gmra.mxu0 %v254
    %v256 = vpop.f32.mrf.mxu0
    %v257 = vadd.f32 %v170, %v256
    %v258 = vpop.f32.mrf.mxu0
    %259 = vdwg.mxu0
    %260 = vmatprep.subr.mxu0 0.0
    %261 = vmatpush1.msra.mxu0 0.0
    %262 = vmatprep.subr.mxu0 0.0
    %263 = vmatpush1.msra.mxu0 0.0
    %264 = vmatprep.subr.mxu0 0.0
    %265 = vmatpush1.msra.mxu0 0.0
    %266 = vmatprep.subr.mxu0 0.0
    %267 = vmatpush1.msra.mxu0 0.0
    %268 = vmatprep.subr.mxu0 0.0
    %269 = vmatpush1.msra.mxu0 0.0
    %270 = vmatprep.subr.mxu0 0.0
    %271 = vmatpush1.msra.mxu0 0.0
    %272 = vmatprep.subr.mxu0 0.0
    %273 = vmatpush1.msra.mxu0 0.0
    %274 = vmatprep.subr.mxu0 0.0
    %275 = vmatpush1.msra.mxu0 0.0
    %276 = vmatprep.subr.mxu0 0.0
    %277 = vmatpush1.msra.mxu0 0.0
    %278 = vmatprep.subr.mxu0 0.0
    %279 = vmatpush1.msra.mxu0 0.0
    %280 = vmatprep.subr.mxu0 0.0
    %281 = vmatpush1.msra.mxu0 0.0
    %282 = vmatprep.subr.mxu0 0.0
    %283 = vmatpush1.msra.mxu0 0.0
    %284 = vmatprep.subr.mxu0 0.0
    %285 = vmatpush1.msra.mxu0 0.0
    %286 = vmatprep.subr.mxu0 0.0
    %287 = vmatpush1.msra.mxu0 0.0
    %288 = vmatprep.subr.mxu0 0.0
    %v289 = vand.u32 %v78, 4294901760
    %v290 = vsub.f32 %v78, %v289
    %291 = vmatpush1.msra.mxu0 %v290
    %292 = vmatprep.subr.mxu0 0.0
    %v293 = vand.u32 %v77, 4294901760
    %v294 = vsub.f32 %v77, %v293
    %295 = vmatpush1.msra.mxu0 %v294
    %296 = vmatprep.subr.mxu0 0.0
    %297 = vmatpush2.msra.mxu0 0.0
    %298 = vmatprep.subr.mxu0 0.0
    %299 = vmatpush2.msra.mxu0 0.0
    %300 = vmatprep.subr.mxu0 0.0
    %301 = vmatpush2.msra.mxu0 0.0
    %302 = vmatprep.subr.mxu0 0.0
    %303 = vmatpush2.msra.mxu0 0.0
    %304 = vmatprep.subr.mxu0 0.0
    %305 = vmatpush2.msra.mxu0 0.0
    %306 = vmatprep.subr.mxu0 0.0
    %307 = vmatpush2.msra.mxu0 0.0
    %308 = vmatprep.subr.mxu0 0.0
    %309 = vmatpush2.msra.mxu0 0.0
    %310 = vmatprep.subr.mxu0 0.0
    %311 = vmatpush2.msra.mxu0 0.0
    %312 = vmatprep.subr.mxu0 0.0
    %313 = vmatpush2.msra.mxu0 0.0
    %314 = vmatprep.subr.mxu0 0.0
    %315 = vmatpush2.msra.mxu0 0.0
    %316 = vmatprep.subr.mxu0 0.0
    %317 = vmatpush2.msra.mxu0 0.0
    %318 = vmatprep.subr.mxu0 0.0
    %319 = vmatpush2.msra.mxu0 0.0
    %320 = vmatprep.subr.mxu0 0.0
    %321 = vmatpush2.msra.mxu0 0.0
    %322 = vmatprep.subr.mxu0 0.0
    %323 = vmatpush2.msra.mxu0 0.0
    %324 = vmatprep.subr.mxu0 0.0
    %325 = vmatpush2.msra.mxu0 0.0
    %326 = vmatprep.subr.mxu0 0.0
    %327 = vmatpush2.msra.mxu0 0.0
    %328 = vmatprep.mubr.f32.mxu0 0.0
    %v329 = vand.u32 %v81, 4294901760
    %v330 = vsub.f32 %v81, %v329
    %331 = vmatmul.mubr.f32.gmra.mxu0 %v330
    %v332 = vpop.f32.mrf.mxu0
    %v333 = vadd.f32 %v251, %v332
    %v334 = vpop.f32.mrf.mxu0
    %335 = vmatprep.mubr.f32.mxu0 0.0
    %v336 = vand.u32 %v84, 4294901760
    %v337 = vsub.f32 %v84, %v336
    %338 = vmatmul.mubr.f32.gmra.mxu0 %v337
    %v339 = vpop.f32.mrf.mxu0
    %v340 = vadd.f32 %v257, %v339
    %v341 = vpop.f32.mrf.mxu0
    %342 = vdwg.mxu0
    %343 = vmatprep.subr.mxu0 0.0
    %344 = vmatpush1.msra.mxu0 0.0
    %345 = vmatprep.subr.mxu0 0.0
    %346 = vmatpush1.msra.mxu0 0.0
    %347 = vmatprep.subr.mxu0 0.0
    %348 = vmatpush1.msra.mxu0 0.0
    %349 = vmatprep.subr.mxu0 0.0
    %350 = vmatpush1.msra.mxu0 0.0
    %351 = vmatprep.subr.mxu0 0.0
    %352 = vmatpush1.msra.mxu0 0.0
    %353 = vmatprep.subr.mxu0 0.0
    %354 = vmatpush1.msra.mxu0 0.0
    %355 = vmatprep.subr.mxu0 0.0
    %356 = vmatpush1.msra.mxu0 0.0
    %357 = vmatprep.subr.mxu0 0.0
    %358 = vmatpush1.msra.mxu0 0.0
    %359 = vmatprep.subr.mxu0 0.0
    %360 = vmatpush1.msra.mxu0 0.0
    %361 = vmatprep.subr.mxu0 0.0
    %362 = vmatpush1.msra.mxu0 0.0
    %363 = vmatprep.subr.mxu0 0.0
    %364 = vmatpush1.msra.mxu0 0.0
    %365 = vmatprep.subr.mxu0 0.0
    %366 = vmatpush1.msra.mxu0 0.0
    %367 = vmatprep.subr.mxu0 0.0
    %368 = vmatpush1.msra.mxu0 0.0
    %369 = vmatprep.subr.mxu0 0.0
    %370 = vmatpush1.msra.mxu0 0.0
    %371 = vmatprep.subr.mxu0 0.0
    %v372 = vand.u32 %v78, 4294901760
    %373 = vmatpush1.msra.mxu0 %v372
    %374 = vmatprep.subr.mxu0 0.0
    %v375 = vand.u32 %v77, 4294901760
    %376 = vmatpush1.msra.mxu0 %v375
    %377 = vmatprep.subr.mxu0 0.0
    %378 = vmatpush2.msra.mxu0 0.0
    %379 = vmatprep.subr.mxu0 0.0
    %380 = vmatpush2.msra.mxu0 0.0
    %381 = vmatprep.subr.mxu0 0.0
    %382 = vmatpush2.msra.mxu0 0.0
    %383 = vmatprep.subr.mxu0 0.0
    %384 = vmatpush2.msra.mxu0 0.0
    %385 = vmatprep.subr.mxu0 0.0
    %386 = vmatpush2.msra.mxu0 0.0
    %387 = vmatprep.subr.mxu0 0.0
    %388 = vmatpush2.msra.mxu0 0.0
    %389 = vmatprep.subr.mxu0 0.0
    %390 = vmatpush2.msra.mxu0 0.0
    %391 = vmatprep.subr.mxu0 0.0
    %392 = vmatpush2.msra.mxu0 0.0
    %393 = vmatprep.subr.mxu0 0.0
    %394 = vmatpush2.msra.mxu0 0.0
    %395 = vmatprep.subr.mxu0 0.0
    %396 = vmatpush2.msra.mxu0 0.0
    %397 = vmatprep.subr.mxu0 0.0
    %398 = vmatpush2.msra.mxu0 0.0
    %399 = vmatprep.subr.mxu0 0.0
    %400 = vmatpush2.msra.mxu0 0.0
    %401 = vmatprep.subr.mxu0 0.0
    %402 = vmatpush2.msra.mxu0 0.0
    %403 = vmatprep.subr.mxu0 0.0
    %404 = vmatpush2.msra.mxu0 0.0
    %405 = vmatprep.subr.mxu0 0.0
    %406 = vmatpush2.msra.mxu0 0.0
    %407 = vmatprep.subr.mxu0 0.0
    %408 = vmatpush2.msra.mxu0 0.0
    %409 = vmatprep.mubr.f32.mxu0 0.0
    %v410 = vand.u32 %v81, 4294901760
    %v411 = vsub.f32 %v81, %v410
    %v412 = vand.u32 %v411, 4294901760
    %413 = vmatmul.mubr.f32.gmra.mxu0 %v412
    %v414 = vpop.f32.mrf.mxu0
    %v415 = vadd.f32 %v333, %v414
    %v416 = vpop.f32.mrf.mxu0
    %417 = vmatprep.mubr.f32.mxu0 0.0
    %v418 = vand.u32 %v84, 4294901760
    %v419 = vsub.f32 %v84, %v418
    %v420 = vand.u32 %v419, 4294901760
    %421 = vmatmul.mubr.f32.gmra.mxu0 %v420
    %v422 = vpop.f32.mrf.mxu0
    %v423 = vadd.f32 %v340, %v422
    %v424 = vpop.f32.mrf.mxu0
    %425 = vdwg.mxu0
    %426 = vmatprep.subr.mxu0 0.0
    %427 = vmatpush1.msra.mxu0 0.0
    %428 = vmatprep.subr.mxu0 0.0
    %429 = vmatpush1.msra.mxu0 0.0
    %430 = vmatprep.subr.mxu0 0.0
    %431 = vmatpush1.msra.mxu0 0.0
    %432 = vmatprep.subr.mxu0 0.0
    %433 = vmatpush1.msra.mxu0 0.0
    %434 = vmatprep.subr.mxu0 0.0
    %435 = vmatpush1.msra.mxu0 0.0
    %436 = vmatprep.subr.mxu0 0.0
    %437 = vmatpush1.msra.mxu0 0.0
    %438 = vmatprep.subr.mxu0 0.0
    %439 = vmatpush1.msra.mxu0 0.0
    %440 = vmatprep.subr.mxu0 0.0
    %441 = vmatpush1.msra.mxu0 0.0
    %442 = vmatprep.subr.mxu0 0.0
    %443 = vmatpush1.msra.mxu0 0.0
    %444 = vmatprep.subr.mxu0 0.0
    %445 = vmatpush1.msra.mxu0 0.0
    %446 = vmatprep.subr.mxu0 0.0
    %447 = vmatpush1.msra.mxu0 0.0
    %448 = vmatprep.subr.mxu0 0.0
    %449 = vmatpush1.msra.mxu0 0.0
    %450 = vmatprep.subr.mxu0 0.0
    %451 = vmatpush1.msra.mxu0 0.0
    %452 = vmatprep.subr.mxu0 0.0
    %453 = vmatpush1.msra.mxu0 0.0
    %454 = vmatprep.subr.mxu0 0.0
    %v455 = vand.u32 %v78, 4294901760
    %v456 = vsub.f32 %v78, %v455
    %v457 = vand.u32 %v456, 4294901760
    %458 = vmatpush1.msra.mxu0 %v457
    %459 = vmatprep.subr.mxu0 0.0
    %v460 = vand.u32 %v77, 4294901760
    %v461 = vsub.f32 %v77, %v460
    %v462 = vand.u32 %v461, 4294901760
    %463 = vmatpush1.msra.mxu0 %v462
    %464 = vmatprep.subr.mxu0 0.0
    %465 = vmatpush2.msra.mxu0 0.0
    %466 = vmatprep.subr.mxu0 0.0
    %467 = vmatpush2.msra.mxu0 0.0
    %468 = vmatprep.subr.mxu0 0.0
    %469 = vmatpush2.msra.mxu0 0.0
    %470 = vmatprep.subr.mxu0 0.0
    %471 = vmatpush2.msra.mxu0 0.0
    %472 = vmatprep.subr.mxu0 0.0
    %473 = vmatpush2.msra.mxu0 0.0
    %474 = vmatprep.subr.mxu0 0.0
    %475 = vmatpush2.msra.mxu0 0.0
    %476 = vmatprep.subr.mxu0 0.0
    %477 = vmatpush2.msra.mxu0 0.0
    %478 = vmatprep.subr.mxu0 0.0
    %479 = vmatpush2.msra.mxu0 0.0
    %480 = vmatprep.subr.mxu0 0.0
    %481 = vmatpush2.msra.mxu0 0.0
    %482 = vmatprep.subr.mxu0 0.0
    %483 = vmatpush2.msra.mxu0 0.0
    %484 = vmatprep.subr.mxu0 0.0
    %485 = vmatpush2.msra.mxu0 0.0
    %486 = vmatprep.subr.mxu0 0.0
    %487 = vmatpush2.msra.mxu0 0.0
    %488 = vmatprep.subr.mxu0 0.0
    %489 = vmatpush2.msra.mxu0 0.0
    %490 = vmatprep.subr.mxu0 0.0
    %491 = vmatpush2.msra.mxu0 0.0
    %492 = vmatprep.subr.mxu0 0.0
    %493 = vmatpush2.msra.mxu0 0.0
    %494 = vmatprep.subr.mxu0 0.0
    %495 = vmatpush2.msra.mxu0 0.0
    %496 = vmatprep.mubr.f32.mxu0 0.0
    %v497 = vand.u32 %v81, 4294901760
    %498 = vmatmul.mubr.f32.gmra.mxu0 %v497
    %v499 = vpop.f32.mrf.mxu0
    %v500 = vadd.f32 %v415, %v499
    %v501 = vpop.f32.mrf.mxu0
    %502 = vmatprep.mubr.f32.mxu0 0.0
    %v503 = vand.u32 %v84, 4294901760
    %504 = vmatmul.mubr.f32.gmra.mxu0 %v503
    %v505 = vpop.f32.mrf.mxu0
    %v506 = vadd.f32 %v423, %v505
    %v507 = vpop.f32.mrf.mxu0
    %508 = vdwg.mxu0
    %509 = vmatprep.subr.mxu0 0.0
    %510 = vmatpush1.msra.mxu0 0.0
    %511 = vmatprep.subr.mxu0 0.0
    %512 = vmatpush1.msra.mxu0 0.0
    %513 = vmatprep.subr.mxu0 0.0
    %514 = vmatpush1.msra.mxu0 0.0
    %515 = vmatprep.subr.mxu0 0.0
    %516 = vmatpush1.msra.mxu0 0.0
    %517 = vmatprep.subr.mxu0 0.0
    %518 = vmatpush1.msra.mxu0 0.0
    %519 = vmatprep.subr.mxu0 0.0
    %520 = vmatpush1.msra.mxu0 0.0
    %521 = vmatprep.subr.mxu0 0.0
    %522 = vmatpush1.msra.mxu0 0.0
    %523 = vmatprep.subr.mxu0 0.0
    %524 = vmatpush1.msra.mxu0 0.0
    %525 = vmatprep.subr.mxu0 0.0
    %526 = vmatpush1.msra.mxu0 0.0
    %527 = vmatprep.subr.mxu0 0.0
    %528 = vmatpush1.msra.mxu0 0.0
    %529 = vmatprep.subr.mxu0 0.0
    %530 = vmatpush1.msra.mxu0 0.0
    %531 = vmatprep.subr.mxu0 0.0
    %532 = vmatpush1.msra.mxu0 0.0
    %533 = vmatprep.subr.mxu0 0.0
    %534 = vmatpush1.msra.mxu0 0.0
    %535 = vmatprep.subr.mxu0 0.0
    %536 = vmatpush1.msra.mxu0 0.0
    %537 = vmatprep.subr.mxu0 0.0
    %v538 = vand.u32 %v78, 4294901760
    %539 = vmatpush1.msra.mxu0 %v538
    %540 = vmatprep.subr.mxu0 0.0
    %v541 = vand.u32 %v77, 4294901760
    %542 = vmatpush1.msra.mxu0 %v541
    %543 = vmatprep.subr.mxu0 0.0
    %544 = vmatpush2.msra.mxu0 0.0
    %545 = vmatprep.subr.mxu0 0.0
    %546 = vmatpush2.msra.mxu0 0.0
    %547 = vmatprep.subr.mxu0 0.0
    %548 = vmatpush2.msra.mxu0 0.0
    %549 = vmatprep.subr.mxu0 0.0
    %550 = vmatpush2.msra.mxu0 0.0
    %551 = vmatprep.subr.mxu0 0.0
    %552 = vmatpush2.msra.mxu0 0.0
    %553 = vmatprep.subr.mxu0 0.0
    %554 = vmatpush2.msra.mxu0 0.0
    %555 = vmatprep.subr.mxu0 0.0
    %556 = vmatpush2.msra.mxu0 0.0
    %557 = vmatprep.subr.mxu0 0.0
    %558 = vmatpush2.msra.mxu0 0.0
    %559 = vmatprep.subr.mxu0 0.0
    %560 = vmatpush2.msra.mxu0 0.0
    %561 = vmatprep.subr.mxu0 0.0
    %562 = vmatpush2.msra.mxu0 0.0
    %563 = vmatprep.subr.mxu0 0.0
    %564 = vmatpush2.msra.mxu0 0.0
    %565 = vmatprep.subr.mxu0 0.0
    %566 = vmatpush2.msra.mxu0 0.0
    %567 = vmatprep.subr.mxu0 0.0
    %568 = vmatpush2.msra.mxu0 0.0
    %569 = vmatprep.subr.mxu0 0.0
    %570 = vmatpush2.msra.mxu0 0.0
    %571 = vmatprep.subr.mxu0 0.0
    %572 = vmatpush2.msra.mxu0 0.0
    %573 = vmatprep.subr.mxu0 0.0
    %574 = vmatpush2.msra.mxu0 0.0
    %575 = vmatprep.mubr.f32.mxu0 0.0
    %v576 = vand.u32 %v81, 4294901760
    %577 = vmatmul.mubr.f32.gmra.mxu0 %v576
    %v578 = vpop.f32.mrf.mxu0
    %v579 = vadd.f32 %v500, %v578
    %v580 = vpop.f32.mrf.mxu0
    %581 = vmatprep.mubr.f32.mxu0 0.0
    %v582 = vand.u32 %v84, 4294901760
    %583 = vmatmul.mubr.f32.gmra.mxu0 %v582
    %v584 = vpop.f32.mrf.mxu0
    %v585 = vadd.f32 %v506, %v584
    %v586 = vpop.f32.mrf.mxu0
    %587 = vdwg.mxu0
    %vm588 = vcmp.gt.f32.partialorder %v579, 0.5
    %vm589 = vcmp.gt.f32.partialorder %v585, 0.5
    %v590 = vsub.f32 %v73, 1e-20
    %v591 = vsub.f32 %v74, 1e-20
    %v592 = vsub.f32 1.0, %v73
    %v593 = vsub.f32 1.0, %v74
    %v594 = vadd.f32 %v592, 1e-20
    %v595 = vadd.f32 %v593, 1e-20
    %v596 = vsel %vm588, %v590, %v594
    %v597 = vsel %vm589, %v591, %v595
    %v598 = vlog2.pop %v596
    %v599 = vmul.f32 %v598, 0.6931472
    %v600 = vlog2.pop %v597
    %v601 = vmul.f32 %v600, 0.6931472
    %v602 = vld [vmem:[#allocation8] sm:$0x1]
    %v603 = vadd.f32 %v599, %v601
    %v604 = vrot.slane %v603, 4
    %v605 = vadd.f32 %v603, %v604
    %v606 = vrot.slane %v605, 2
    %v607 = vadd.f32 %v605, %v606
    %v608 = vrot.slane %v607, 1
    %v609 = vadd.f32 %v607, %v608
    %v610 = vadd.f32 %v602, %v609
    %611 = vst [vmem:[#allocation8] sm:$0x1] %v610
    // Predicated region
    $region30: #{tpu_custom_call.1} parent=1 // pred_check
      %p612 = pneg %p68
    $region31: #{tpu_custom_call.1} parent=1 // pred_check_branch
      %614 = sbr.rel (%p612) target = $region33
    $region32: #{tpu_custom_call.1} parent=1 // pred_region
      %v615 = vld [vmem:[#allocation8] sm:$0x1]
      %v616 = vmul.f32 %v615, -0.00390625
      %617 = vst [vmem:[#allocation8] sm:$0x1] %v616
    $region33: #{tpu_custom_call.1} parent=1 // pred_fallthru
      _
    // Predicated region
    $region34: #{tpu_custom_call.1} parent=1 // pred_check
      _
    $region35: #{tpu_custom_call.1} parent=1 // pred_check_branch
      %619 = sbr.rel (0) target = $region37
    $region36: #{tpu_custom_call.1} parent=1 // pred_region
      %s621 = ssub.s32 16, 16
      %622 = vsyncadd [#allocation4], %s621
      %s624 = sshll.u32 [#allocation8], 4
      %s625 = int_to_ptr.vmem [resolvable:$true] %s624
      %627 = dma.vmem_to_hbm [thread:$0]  %s625, 16, %s3, [#allocation4]
    $region37: #{tpu_custom_call.1} parent=1 // pred_fallthru
      _
    // Predicated region
    $region38: #{tpu_custom_call.1} parent=1 // pred_check
      _
    $region39: #{tpu_custom_call.1} parent=1 // pred_check_branch
      %629 = sbr.rel (0) target = $region41
    $region40: #{tpu_custom_call.1} parent=1 // pred_region
      %630 = dma.done [#allocation4], 16
    $region41: #{tpu_custom_call.1} parent=1 // pred_fallthru
      _
    %631 = vsyncpa [#allocation3], 1
    %632 = vsyncpa [#allocation6], 1
    %633 = vsyncpa [#allocation4], 1

</llo_original>
